<compile_context>
chip_gen: v5e
topology: v5e:2x2
jax: 0.10.0
libtpu: 0.0.40
codegen_flags: <defaults>
</compile_context>

<pallas_src>
import numpy as np
import jax
import jax.numpy as jnp
from jax import lax
from jax.experimental import pallas as pl
from jax.experimental.pallas import tpu as pltpu

BN_EPS = 1e-5   # torch.nn.BatchNorm2d default
NP = 16         # pooled columns: [h0..h3, v0..v3, gf, 7 x zero-pad]


def _round_up(n, m):
    return -(-n // m) * m


# --------------------------- pass 1: streaming pooling over x -------------------------
def pooling_kernel(x_ref, p_ref, out_ref):
    # x_ref:   (1, CIN_BLK, H*W)  backbone features, native NCHW layout (channels on rows)
    # p_ref:   (H*W, NP)          static pooling matrix (strip / global averaging weights)
    # out_ref: (1, CIN_BLK, NP)   pooled features (channels on rows)
    xb = x_ref[0].astype(jnp.float32)
    out_ref[0] = jnp.dot(xb, p_ref[...], preferred_element_type=jnp.float32)


# --------------------------- pass 2: fused classifier head ----------------------------
def make_head_kernel(*, B, HB, VB, GB, F, C, CPAD):
    B4 = 4 * B        # real rows per branch (BatchNorm sample count)
    C8 = 8 * C
    R = HB + VB       # rows feeding the instance classifiers

    def head_kernel(d_ref, mask_ref, wcin_ref, bcls_ref,
                    hg_ref, hb_ref, vg_ref, vb_ref,
                    winst_ref, binst_ref, gt_ref,
                    gc_ref, hv_ref):
        # dropout (training): mask is Bernoulli(keep)/keep on the strip rows, 1 elsewhere
        # (gf is NOT dropped in the reference module); padded rows of d are exactly zero.
        d = d_ref[...] * mask_ref[...].astype(jnp.float32)                    # (R+GB, Cin)

        # one MXU pass: [ h 1x1-conv | v 1x1-conv | global classifier (lane-padded) ]
        r = jnp.dot(d, wcin_ref[...], preferred_element_type=jnp.float32)     # (R+GB, 2F+CPAD)

        # global classifier rows (lane-aligned column block, row group padded to 8)
        gc_ref[...] = r[R:R + GB, 2 * F:2 * F + CPAD] + bcls_ref[...]

        # BatchNorm2d (training batch stats over the 4*B real rows) + ReLU.
        # Padded rows of r are zero, so plain sums divided by 4*B are exact
        # (var via E[y^2] - mu^2 keeps the zero rows harmless).
        def bn_relu(y, gamma, beta):
            inv_n = 1.0 / B4
            mu = jnp.sum(y, axis=0, keepdims=True) * inv_n
            ex2 = jnp.sum(y * y, axis=0, keepdims=True) * inv_n
            var = ex2 - mu * mu
            return jnp.maximum((y - mu) * lax.rsqrt(var + BN_EPS) * gamma + beta, 0.0)

        yh = bn_relu(r[0:HB, 0:F], hg_ref[...], hb_ref[...])                  # (HB, F)
        yv = bn_relu(r[HB:R, F:2 * F], vg_ref[...], vb_ref[...])              # (VB, F)
        y_cat = jnp.concatenate([yh, yv], axis=0)                             # (R, F)

        # one MXU pass for all 8 instance classifiers
        full = jnp.dot(y_cat, winst_ref[...], preferred_element_type=jnp.float32)  # (R, 8C)

        # keep only the diagonal column-block matching each row's strip, then reduce the
        # rows of each batch with a tiny static 0/1 matmul (Gt also drops padded rows).
        row = lax.broadcasted_iota(jnp.int32, (R, C8), 0)
        col = lax.broadcasted_iota(jnp.int32, (R, C8), 1)
        branch = (row >= HB).astype(jnp.int32)          # 0 = h rows, 1 = v rows
        local = row - branch * HB
        blk = branch * 4 + local // B                   # strip-major rows: local = i*B + b
        masked = jnp.where((col // C) == blk, full, 0.0)
        reduced = jnp.dot(gt_ref[...], masked, preferred_element_type=jnp.float32)  # (GB, 8C)

        hv_ref[...] = reduced + binst_ref[...]

    return head_kernel


# ------------------------------------ parameters --------------------------------------
def init_params(key, *, num_classes, num_features, in_channels):
    """Pre-packed parameters with the same per-block initialization as the PyTorch module."""
    C, F, Ci = num_classes, num_features, in_channels
    CPAD = _round_up(C, 128)                      # lane-pad the classifier block to 128
    ks = jax.random.split(key, 4)
    # classifier = nn.Linear(1024, C)  (stored transposed (Cin, C), zero-padded to CPAD)
    w_cls = jax.random.normal(ks[0], (Ci, C), jnp.float32) / jnp.sqrt(float(Ci))
    w_cls = jnp.zeros((Ci, CPAD), jnp.float32).at[:, :C].set(w_cls)
    b_cls = jnp.zeros((1, CPAD), jnp.float32)
    # local{h,v}_conv = Conv2d(1024, F, 1, bias=False), kaiming_normal(mode='fan_out')
    std_conv = (2.0 / F) ** 0.5
    wh_conv = jax.random.normal(ks[1], (Ci, F), jnp.float32) * std_conv
    wv_conv = jax.random.normal(ks[2], (Ci, F), jnp.float32) * std_conv
    w_cin = jnp.concatenate([wh_conv, wv_conv, w_cls], axis=1)        # (Ci, 2F + CPAD)
    # BatchNorm2d(F): weight=1, bias=0
    gamma = jnp.ones((1, F), jnp.float32)
    beta = jnp.zeros((1, F), jnp.float32)
    # {h,v}instance0..3: Linear(F, C), weight ~ N(0, 0.001), bias = 0, packed (F, 8C)
    w_inst = jax.random.normal(ks[3], (F, 8 * C), jnp.float32) * 0.001
    b_inst = jnp.zeros((1, 8 * C), jnp.float32)
    return dict(
        w_cin=w_cin, b_cls=b_cls,
        h_gamma=gamma, h_beta=beta, v_gamma=gamma, v_beta=beta,
        w_inst=w_inst, b_inst=b_inst,
        num_classes=C, num_features=F, cpad=CPAD,
    )


# ------------------------------------- wrapper -----------------------------------------
def densenet121_ap_heads(x_nchw, params, *, rng_key=None, seed=0, dropout_p=0.5):
    """Forward of DenseNet121_ap (gf=hf=vf=True, training) given the backbone feature map.

    x_nchw: (B, 1024, H, W) feature map, any float dtype (bf16 recommended -- it is
    streamed once, untouched, straight into the pooling kernel).
    """
    B, Cin, H, W = x_nchw.shape
    C = params["num_classes"]
    F = params["num_features"]
    CPAD = params["cpad"]
    HW = H * W
    B4 = 4 * B
    HB = VB = _round_up(B4, 8)     # 8-row-aligned h / v row groups
    GB = _round_up(B, 8)           # 8-row-aligned global-feature group
    M = HB + VB + GB

    # ---- static pooling matrix P: columns = 4 h-strip means, 4 v-strip means, global mean
    # (matches F.avg_pool2d with kernel=(kx, W)/stride=(sx, W) and its transpose, overlap ok)
    sh, kh = H // 4, H - 3 * (H // 4)
    sv, kv = W // 4, W - 3 * (W // 4)
    idx = np.arange(HW).reshape(H, W)
    P_np = np.zeros((HW, NP), np.float32)
    for i in range(4):
        P_np[idx[i * sh:i * sh + kh, :].reshape(-1), i] = 1.0 / (kh * W)
        P_np[idx[:, i * sv:i * sv + kv].reshape(-1), 4 + i] = 1.0 / (kv * H)
    P_np[:, 8] = 1.0 / (H * W)
    P = jnp.asarray(P_np)

    # ---- pass 1: stream x once (native layout), fully parallel grid -> both TCs on v7x.
    # Per-buffer tile is CIN_BLK * HW * bytes (tiny here); grow CIN_BLK toward ~2-4 MiB
    # per buffer for large feature maps.
    cin_blk = 512 if Cin % 512 == 0 else (256 if Cin % 256 == 0 else Cin)
    x_r = x_nchw.reshape(B, Cin, HW)          # contiguous collapse of trailing dims: free

    pooled_t = pl.pallas_call(
        pooling_kernel,
        grid=(B, Cin // cin_blk),
        in_specs=[
            pl.BlockSpec((1, cin_blk, HW), lambda b, c: (b, c, 0)),
            pl.BlockSpec((HW, NP), lambda b, c: (0, 0)),
        ],
        out_specs=pl.BlockSpec((1, cin_blk, NP), lambda b, c: (b, c, 0)),
        out_shape=jax.ShapeDtypeStruct((B, Cin, NP), jnp.float32),
        compiler_params=pltpu.CompilerParams(
            dimension_semantics=("parallel", "parallel"),
            vmem_limit_bytes=32 * 1024 * 1024),
    )(x_r, P)

    # ---- tiny layout glue on the pooled features (B*Cin*NP floats, ~1000x smaller than x):
    # d_all rows = [h strips strip-major | pad | v strips strip-major | pad | gf | pad],
    # every group padded with zero rows to a multiple of 8 so pass-2 slices are aligned.
    h_rows = jnp.transpose(pooled_t[:, :, 0:4], (2, 0, 1)).reshape(B4, Cin)
    v_rows = jnp.transpose(pooled_t[:, :, 4:8], (2, 0, 1)).reshape(B4, Cin)
    g_rows = pooled_t[:, :, 8]

    def pad_rows(a, n, value=0.0):
        return jnp.pad(a, ((0, n - a.shape[0]), (0, 0)), constant_values=value)

    d_all = jnp.concatenate(
        [pad_rows(h_rows, HB), pad_rows(v_rows, VB), pad_rows(g_rows, GB)], axis=0)

    # dropout keep-mask (training), pre-scaled by 1/keep_p, bf16 to halve its traffic;
    # gf rows and padding rows get 1.0 (gf is not dropped in the reference module).
    if dropout_p > 0.0:
        keep = 1.0 - dropout_p
        if rng_key is None:
            rng_key = jax.random.PRNGKey(seed)
        k1, k2 = jax.random.split(rng_key)
        mh = jax.random.bernoulli(k1, keep, (B4, Cin)).astype(jnp.float32) / keep
        mv = jax.random.bernoulli(k2, keep, (B4, Cin)).astype(jnp.float32) / keep
    else:
        mh = jnp.ones((B4, Cin), jnp.float32)
        mv = jnp.ones((B4, Cin), jnp.float32)
    mask = jnp.concatenate(
        [pad_rows(mh, HB, 1.0), pad_rows(mv, VB, 1.0), jnp.ones((GB, Cin), jnp.float32)],
        axis=0).astype(jnp.bfloat16)

    # static 0/1 matrix that sums each batch's 8 selected instance rows (padded rows -> 0)
    Gt_np = np.zeros((GB, HB + VB), np.float32)
    for branch in range(2):
        for i in range(4):
            for b in range(B):
                Gt_np[b, branch * HB + i * B + b] = 1.0
    Gt = jnp.asarray(Gt_np)

    # ---- pass 2: fused head (dropout mul, both MXU matmuls, BN+ReLU, instance select)
    head_kernel = make_head_kernel(B=B, HB=HB, VB=VB, GB=GB, F=F, C=C, CPAD=CPAD)
    tensor_args = [
        d_all, mask,
        params["w_cin"], params["b_cls"],
        params["h_gamma"], params["h_beta"],
        params["v_gamma"], params["v_beta"],
        params["w_inst"], params["b_inst"],
        Gt,
    ]

    def full_spec(shape):
        nd = len(shape)
        return pl.BlockSpec(shape, lambda i, nd=nd: (0,) * nd)

    gc_full, hv_full = pl.pallas_call(
        head_kernel,
        grid=(1,),
        in_specs=[full_spec(a.shape) for a in tensor_args],
        out_specs=[full_spec((GB, CPAD)), full_spec((GB, 8 * C))],
        out_shape=[
            jax.ShapeDtypeStruct((GB, CPAD), jnp.float32),
            jax.ShapeDtypeStruct((GB, 8 * C), jnp.float32),
        ],
        compiler_params=pltpu.CompilerParams(
            dimension_semantics=("arbitrary",),
            vmem_limit_bytes=32 * 1024 * 1024),
    )(*tensor_args)

    # Match the PyTorch return: (gc, hc0, hc1, hc2, hc3, vc0, vc1, vc2, vc3)
    gc = gc_full[:B, :C]
    hv = hv_full[:B, :]
    hc = [hv[:, i * C:(i + 1) * C] for i in range(4)]
    vc = [hv[:, (4 + i) * C:(5 + i) * C] for i in range(4)]
    return (gc, *hc, *vc)


if __name__ == "__main__":
    key = jax.random.PRNGKey(0)
    k_x, k_p, k_d = jax.random.split(key, 3)

    # Small, shape-consistent example: backbone feature map (B, 1024, 8, 8)
    # (what densenet121.features produces for a 256x256 image). The "backbone" is
    # assumed to emit bf16 activations so x is streamed at half the bytes.
    B, Cin, H, W = 2, 1024, 8, 8
    num_classes = 16
    num_features = 256

    x_feat = jax.random.normal(k_x, (B, Cin, H, W), dtype=jnp.float32).astype(jnp.bfloat16)
    params = init_params(
        k_p, num_classes=num_classes, num_features=num_features, in_channels=Cin
    )

    outs = densenet121_ap_heads(x_feat, params, rng_key=k_d, dropout_p=0.5)
    outs = jax.block_until_ready(outs)

    assert len(outs) == 9
    for o in outs:
        assert o.shape == (B, num_classes)
        assert bool(jnp.all(jnp.isfinite(o)))

    print("KERNEL_OK")
</pallas_src>

<mosaic_0001>
module attributes {stable_mosaic.version = 11 : i64} {
  func.func @pooling_kernel(%arg0: i32, %arg1: i32, %arg2: memref<1x512x64xbf16, #tpu.memory_space<vmem>>, %arg3: memref<64x16xf32, #tpu.memory_space<vmem>>, %arg4: memref<1x512x16xf32, #tpu.memory_space<vmem>>) attributes {dimension_semantics = [#tpu.dimension_semantics<parallel>, #tpu.dimension_semantics<parallel>], iteration_bounds = array<i64: 2, 2>, scalar_prefetch = 0 : i64, scratch_operands = 0 : i64, tpu.core_type = #tpu.core_type<tc>, window_params = [{transform_indices = @transform_0, window_bounds = array<i64: 1, 512, 64>}, {pipeline_mode = #tpu.pipeline_mode<synchronous>, transform_indices = @transform_1, window_bounds = array<i64: 64, 16>}, {transform_indices = @transform_2, window_bounds = array<i64: 1, 512, 16>}]} {
    %c0 = arith.constant 0 : index
    %c0_0 = arith.constant 0 : index
    %c0_1 = arith.constant 0 : index
    %0 = vector.load %arg2[%c0, %c0_0, %c0_1] : memref<1x512x64xbf16, #tpu.memory_space<vmem>>, vector<1x512x64xbf16>
    %1 = vector.shape_cast %0 : vector<1x512x64xbf16> to vector<512x64xbf16>
    %2 = arith.extf %1 : vector<512x64xbf16> to vector<512x64xf32>
    %c0_2 = arith.constant 0 : index
    %c0_3 = arith.constant 0 : index
    %3 = vector.load %arg3[%c0_2, %c0_3] : memref<64x16xf32, #tpu.memory_space<vmem>>, vector<64x16xf32>
    %cst = arith.constant dense<0.000000e+00> : vector<512x16xf32>
    %4 = tpu.matmul %2, %3, %cst {dimension_numbers = #tpu.dot_dimension_numbers<[1], [0], [0], [1], [0, 0, 1, 1], [], []>} : vector<512x64xf32>, vector<64x16xf32>, vector<512x16xf32> -> vector<512x16xf32>
    %c0_4 = arith.constant 0 : index
    %c0_5 = arith.constant 0 : index
    %c0_6 = arith.constant 0 : index
    %5 = vector.load %arg4[%c0_4, %c0_5, %c0_6] : memref<1x512x16xf32, #tpu.memory_space<vmem>>, vector<1x512x16xf32>
    %6 = vector.shape_cast %5 : vector<1x512x16xf32> to vector<512x16xf32>
    %7 = vector.shape_cast %4 : vector<512x16xf32> to vector<1x512x16xf32>
    tpu.vector_store %arg4[%c0_4, %c0_5, %c0_6], %7 {strides = array<i32>} : memref<1x512x16xf32, #tpu.memory_space<vmem>>, vector<1x512x16xf32>,
    return
  }
  func.func @transform_0(%arg0: i32, %arg1: i32) -> (i32, i32, i32) {
    %c0_i32 = arith.constant 0 : i32
    %c0_i32_0 = arith.constant 0 : i32
    return %arg0, %arg1, %c0_i32 : i32, i32, i32
  }
  func.func @transform_1(%arg0: i32, %arg1: i32) -> (i32, i32) {
    %c0_i32 = arith.constant 0 : i32
    %c0_i32_0 = arith.constant 0 : i32
    %c0_i32_1 = arith.constant 0 : i32
    return %c0_i32, %c0_i32_0 : i32, i32
  }
  func.func @transform_2(%arg0: i32, %arg1: i32) -> (i32, i32, i32) {
    %c0_i32 = arith.constant 0 : i32
    %c0_i32_0 = arith.constant 0 : i32
    return %arg0, %arg1, %c0_i32 : i32, i32, i32
  }
}

</mosaic_0001>

<llo_original>
// kernel: tpu_custom_call.1
$region0: #{tpu_custom_call.1}
  #allocation0 [shape = 'u32[]', space=smem, size = 0x4, offset = 0x4, fixed_abs, tag = 'smem constant byte address 0x4 - core index']
  #allocation1 [shape = 'u32[72,128]{1,0:T(1,128)}', space=vmem, size = 0x9000, scoped, tag = 'internal scratch']
  %s0 = inlined_call_operand.vmem [shape: bf16[2,1024,64], index: 0, kind: input, shape index: {}]
  %s1 = inlined_call_operand.vmem [shape: f32[64,16], index: 1, kind: input, shape index: {}]
  %s2 = inlined_call_operand.vmem [shape: f32[2,1024,16], index: 2, kind: output, shape index: {}]
  %s3 = sld [smem:[#allocation0]]
  $region41: #{tpu_custom_call.1} parent=0
    _
  %s5 = ssub.s32 1, %s3
  %s6 = scalar_select 0, %s5, %s3
  loop: start=0, step=1, limit=6
  $region2: #{tpu_custom_call.1} parent=0 // loop_pre_header
    _
  $region3: #{tpu_custom_call.1} parent=0 // loop_header
    %s8 = sphi 0, %s12
    %p9 = scmp.ge.s32.totalorder %s8, 6
    %s15 = sphi 0, %s27
    %s16 = sphi 0, %s23
    %s17 = sphi 0, %s15
    %s18 = sphi 0, %s16
    %s19 = sphi 0, %s17
    %s20 = sphi 0, %s18
    %s32 = sphi 0, %s34
    %s35 = sphi 0, %s32
    %s36 = sphi 0, %s35
    %s52 = sphi 0, %s36
    %s56 = sphi 0, %s56
    %s58 = sphi 0, %s56
    %s59 = sphi 0, %s58
    %s73 = sphi 0, %s59
    %s81 = sphi 0, %s83
    %s84 = sphi 0, %s81
    %s85 = sphi 0, %s84
    %s101 = sphi 0, %s85
  $region4: #{tpu_custom_call.1} parent=0 // loop_header_branch
    %11 = sbr.rel (%p9) target = $region8
  $region5: #{tpu_custom_call.1} parent=0 // loop_body
    %s13 = ssub.s32 %s8, 1
    %s14 = ssub.s32 %s8, 2
    %s21 = sadd.s32 1, %s16
    %p22 = scmp.ge.s32.totalorder %s21, 2
    %s23 = scalar_select %p22, 0, %s21
    %s24 = sadd.s32 1, %s15
    %s25 = scalar_select %p22, %s24, %s15
    %p26 = scmp.ge.s32.totalorder %s25, 2
    %s27 = scalar_select %p26, 0, %s25
    %s28 = ssub.s32 %s15, %s27
    %s29 = ssub.s32 %s16, %s23
    %s30 = sor.u32 %s28, %s29
    %p31 = scmp.eq.s32.totalorder %s30, 0
    %s33 = sadd.s32 %s32, 1
    %s34 = scalar_select %p31, %s32, %s33
    %p37 = pneg %p31
    %p38 = scmp.eq.s32.totalorder %s8, 3
    %p39 = por %p37, %p38
    %p40 = scmp.ne.s32.totalorder %s32, %s35
    %p41 = scmp.eq.s32.totalorder %s8, 0
    %p42 = por %p40, %p41
    %p43 = scmp.ne.s32.totalorder %s32, %s35
    %p44 = scmp.eq.s32.totalorder %s13, 3
    %p45 = por %p43, %p44
    %p46 = scmp.ne.s32.totalorder %s35, %s36
    %p47 = scmp.eq.s32.totalorder %s13, 0
    %p48 = por %p46, %p47
    %p49 = scmp.ne.s32.totalorder %s35, %s36
    %p50 = scmp.eq.s32.totalorder %s14, 3
    %p51 = por %p49, %p50
    %p53 = scmp.ne.s32.totalorder %s36, %s52
    %p54 = scmp.eq.s32.totalorder %s14, 0
    %p55 = por %p53, %p54
    %s57 = sadd.s32 %s56, 1
    %p60 = scmp.eq.s32.totalorder %s8, 3
    %p61 = scmp.ne.s32.totalorder %s56, %s58
    %p62 = scmp.eq.s32.totalorder %s8, 0
    %p63 = por %p61, %p62
    %p64 = scmp.ne.s32.totalorder %s56, %s58
    %p65 = scmp.eq.s32.totalorder %s13, 3
    %p66 = por %p64, %p65
    %p67 = scmp.ne.s32.totalorder %s58, %s59
    %p68 = scmp.eq.s32.totalorder %s13, 0
    %p69 = por %p67, %p68
    %p70 = scmp.ne.s32.totalorder %s58, %s59
    %p71 = scmp.eq.s32.totalorder %s14, 3
    %p72 = por %p70, %p71
    %p74 = scmp.ne.s32.totalorder %s59, %s73
    %p75 = scmp.eq.s32.totalorder %s14, 0
    %p76 = por %p74, %p75
    %s77 = ssub.s32 %s15, %s27
    %s78 = ssub.s32 %s16, %s23
    %s79 = sor.u32 %s77, %s78
    %p80 = scmp.eq.s32.totalorder %s79, 0
    %s82 = sadd.s32 %s81, 1
    %s83 = scalar_select %p80, %s81, %s82
    %p86 = pneg %p80
    %p87 = scmp.eq.s32.totalorder %s8, 3
    %p88 = por %p86, %p87
    %p89 = scmp.ne.s32.totalorder %s81, %s84
    %p90 = scmp.eq.s32.totalorder %s8, 0
    %p91 = por %p89, %p90
    %p92 = scmp.ne.s32.totalorder %s81, %s84
    %p93 = scmp.eq.s32.totalorder %s13, 3
    %p94 = por %p92, %p93
    %p95 = scmp.ne.s32.totalorder %s84, %s85
    %p96 = scmp.eq.s32.totalorder %s13, 0
    %p97 = por %p95, %p96
    %p98 = scmp.ne.s32.totalorder %s84, %s85
    %p99 = scmp.eq.s32.totalorder %s14, 3
    %p100 = por %p98, %p99
    %p102 = scmp.ne.s32.totalorder %s85, %s101
    %p103 = scmp.eq.s32.totalorder %s14, 0
    %p104 = por %p102, %p103
    %p105 = scmp.le.s32.totalorder 1, %s8
    %p106 = scmp.lt.s32.totalorder %s8, 5
    %p107 = pnand %p105, %p106
    %p108 = pneg %p107
    // Predicated region
    $region9: #{tpu_custom_call.1} parent=5 // pred_check
      _
    $region10: #{tpu_custom_call.1} parent=5 // pred_check_branch
      %110 = sbr.rel (%p107) target = $region12
    $region11: #{tpu_custom_call.1} parent=5 // pred_region
      %s111 = ssub.s32 %s8, 1
      // Predicated region
      $region13: #{tpu_custom_call.1} parent=11 // pred_check
        %p112 = pneg %p69
      $region14: #{tpu_custom_call.1} parent=11 // pred_check_branch
        %114 = sbr.rel (%p112) target = $region16
      $region15: #{tpu_custom_call.1} parent=11 // pred_region
        _
      $region16: #{tpu_custom_call.1} parent=11 // pred_fallthru
        _
    $region12: #{tpu_custom_call.1} parent=5 // pred_fallthru
      _
    %p115 = scmp.lt.s32.totalorder %s8, 4
    // Predicated region
    $region17: #{tpu_custom_call.1} parent=5 // pred_check
      %p116 = pneg %p115
    $region18: #{tpu_custom_call.1} parent=5 // pred_check_branch
      %118 = sbr.rel (%p116) target = $region20
    $region19: #{tpu_custom_call.1} parent=5 // pred_region
      // Predicated region
      $region21: #{tpu_custom_call.1} parent=19 // pred_check
        %p119 = pneg %p42
      $region22: #{tpu_custom_call.1} parent=19 // pred_check_branch
        %121 = sbr.rel (%p119) target = $region24
      $region23: #{tpu_custom_call.1} parent=19 // pred_region
        %s122 = smul.u32 64, %s16
        %p123 = scmp.lt.s32.totalorder %s15, 1
        %s124 = scalar_select %p123, %s15, 1
        %p125 = scmp.lt.s32.totalorder %s122, 127
        %s126 = scalar_select %p125, %s122, 127
        %s127 = smul.addr %s124, 128
        %s128 = sadd.s32 %s126, %s127
        %s129 = smul.addr %s128, 4
        %s130 = scalar_lea.vmem %s0, %s129
        %s131 = smul.u32 64, %s16
      $region24: #{tpu_custom_call.1} parent=19 // pred_fallthru
        _
    $region20: #{tpu_custom_call.1} parent=5 // pred_fallthru
      _
    %p132 = scmp.le.s32.totalorder 1, %s8
    %p133 = scmp.lt.s32.totalorder %s8, 5
    %p134 = pnand %p132, %p133
    %p135 = pneg %p134
    // Predicated region
    $region25: #{tpu_custom_call.1} parent=5 // pred_check
      _
    $region26: #{tpu_custom_call.1} parent=5 // pred_check_branch
      %137 = sbr.rel (%p134) target = $region28
    $region27: #{tpu_custom_call.1} parent=5 // pred_region
      %s138 = ssub.s32 %s8, 1
      %s139 = smul.u32 64, %s18
      %p140 = scmp.lt.s32.totalorder %s17, 1
      %s141 = scalar_select %p140, %s17, 1
      %p142 = scmp.lt.s32.totalorder %s139, 127
      %s143 = scalar_select %p142, %s139, 127
      %s144 = smul.addr %s141, 128
      %s145 = sadd.s32 %s143, %s144
      %s146 = smul.addr %s145, 4
      %s147 = scalar_lea.vmem %s0, %s146
      %p148 = pneg %p48
      %p149 = pneg %p45
      %p150 = pneg %p69
      %p151 = pneg %p66
      %p152 = pneg %p97
      %p153 = pneg %p94
      %s154 = smul.u32 64, %s18
      %p155 = scmp.lt.s32.totalorder %s17, 1
      %s156 = scalar_select %p155, %s17, 1
      %p157 = scmp.lt.s32.totalorder %s154, 127
      %s158 = scalar_select %p157, %s154, 127
      %s159 = smul.addr %s156, 128
      %s160 = sadd.s32 %s158, %s159
      %s161 = smul.addr %s160, 8
      %s162 = scalar_lea.vmem %s2, %s161
      %s163 = smul.u32 64, %s18
      %p164 = scmp.lt.s32.totalorder %s17, 1
      %s165 = scalar_select %p164, %s17, 1
      %p166 = scmp.lt.s32.totalorder %s163, 127
      %s167 = scalar_select %p166, %s163, 127
      %s168 = smul.addr %s165, 128
      %s169 = sadd.s32 %s167, %s168
      %s170 = smul.addr %s169, 4
      %s171 = scalar_lea.vmem %s0, %s170
      %s172 = smul.u32 64, %s18
      %s173 = smul.u32 64, %s18
      %p174 = scmp.lt.s32.totalorder %s17, 1
      %s175 = scalar_select %p174, %s17, 1
      %p176 = scmp.lt.s32.totalorder %s173, 127
      %s177 = scalar_select %p176, %s173, 127
      %s178 = smul.addr %s175, 128
      %s179 = sadd.s32 %s177, %s178
      %s180 = smul.addr %s179, 8
      %s181 = scalar_lea.vmem %s2, %s180
      %s182 = smul.u32 64, %s18
      %v183 = vld [vmem:[%s171] sm:$0xf]
      %v184 = vld [vmem:[%s171 + $0x4] sm:$0xf]
      %v185 = vld [vmem:[%s171 + $0x8] sm:$0xf]
      %v186 = vld [vmem:[%s171 + $0xc] sm:$0xf]
      %v187 = vld [vmem:[%s171 + $0x10] sm:$0xf]
      %v188 = vld [vmem:[%s171 + $0x14] sm:$0xf]
      %v189 = vld [vmem:[%s171 + $0x18] sm:$0xf]
      %v190 = vld [vmem:[%s171 + $0x1c] sm:$0xf]
      %v191 = vld [vmem:[%s171 + $0x20] sm:$0xf]
      %v192 = vld [vmem:[%s171 + $0x24] sm:$0xf]
      %v193 = vld [vmem:[%s171 + $0x28] sm:$0xf]
      %v194 = vld [vmem:[%s171 + $0x2c] sm:$0xf]
      %v195 = vld [vmem:[%s171 + $0x30] sm:$0xf]
      %v196 = vld [vmem:[%s171 + $0x34] sm:$0xf]
      %v197 = vld [vmem:[%s171 + $0x38] sm:$0xf]
      %v198 = vld [vmem:[%s171 + $0x3c] sm:$0xf]
      %v199 = vld [vmem:[%s171 + $0x40] sm:$0xf]
      %v200 = vld [vmem:[%s171 + $0x44] sm:$0xf]
      %v201 = vld [vmem:[%s171 + $0x48] sm:$0xf]
      %v202 = vld [vmem:[%s171 + $0x4c] sm:$0xf]
      %v203 = vld [vmem:[%s171 + $0x50] sm:$0xf]
      %v204 = vld [vmem:[%s171 + $0x54] sm:$0xf]
      %v205 = vld [vmem:[%s171 + $0x58] sm:$0xf]
      %v206 = vld [vmem:[%s171 + $0x5c] sm:$0xf]
      %v207 = vld [vmem:[%s171 + $0x60] sm:$0xf]
      %v208 = vld [vmem:[%s171 + $0x64] sm:$0xf]
      %v209 = vld [vmem:[%s171 + $0x68] sm:$0xf]
      %v210 = vld [vmem:[%s171 + $0x6c] sm:$0xf]
      %v211 = vld [vmem:[%s171 + $0x70] sm:$0xf]
      %v212 = vld [vmem:[%s171 + $0x74] sm:$0xf]
      %v213 = vld [vmem:[%s171 + $0x78] sm:$0xf]
      %v214 = vld [vmem:[%s171 + $0x7c] sm:$0xf]
      %v215 = vld [vmem:[%s171 + $0x80] sm:$0xf]
      %v216 = vld [vmem:[%s171 + $0x84] sm:$0xf]
      %v217 = vld [vmem:[%s171 + $0x88] sm:$0xf]
      %v218 = vld [vmem:[%s171 + $0x8c] sm:$0xf]
      %v219 = vld [vmem:[%s171 + $0x90] sm:$0xf]
      %v220 = vld [vmem:[%s171 + $0x94] sm:$0xf]
      %v221 = vld [vmem:[%s171 + $0x98] sm:$0xf]
      %v222 = vld [vmem:[%s171 + $0x9c] sm:$0xf]
      %v223 = vld [vmem:[%s171 + $0xa0] sm:$0xf]
      %v224 = vld [vmem:[%s171 + $0xa4] sm:$0xf]
      %v225 = vld [vmem:[%s171 + $0xa8] sm:$0xf]
      %v226 = vld [vmem:[%s171 + $0xac] sm:$0xf]
      %v227 = vld [vmem:[%s171 + $0xb0] sm:$0xf]
      %v228 = vld [vmem:[%s171 + $0xb4] sm:$0xf]
      %v229 = vld [vmem:[%s171 + $0xb8] sm:$0xf]
      %v230 = vld [vmem:[%s171 + $0xbc] sm:$0xf]
      %v231 = vld [vmem:[%s171 + $0xc0] sm:$0xf]
      %v232 = vld [vmem:[%s171 + $0xc4] sm:$0xf]
      %v233 = vld [vmem:[%s171 + $0xc8] sm:$0xf]
      %v234 = vld [vmem:[%s171 + $0xcc] sm:$0xf]
      %v235 = vld [vmem:[%s171 + $0xd0] sm:$0xf]
      %v236 = vld [vmem:[%s171 + $0xd4] sm:$0xf]
      %v237 = vld [vmem:[%s171 + $0xd8] sm:$0xf]
      %v238 = vld [vmem:[%s171 + $0xdc] sm:$0xf]
      %v239 = vld [vmem:[%s171 + $0xe0] sm:$0xf]
      %v240 = vld [vmem:[%s171 + $0xe4] sm:$0xf]
      %v241 = vld [vmem:[%s171 + $0xe8] sm:$0xf]
      %v242 = vld [vmem:[%s171 + $0xec] sm:$0xf]
      %v243 = vld [vmem:[%s171 + $0xf0] sm:$0xf]
      %v244 = vld [vmem:[%s171 + $0xf4] sm:$0xf]
      %v245 = vld [vmem:[%s171 + $0xf8] sm:$0xf]
      %v246 = vld [vmem:[%s171 + $0xfc] sm:$0xf]
      %v247 = vunpack.c.l.bf16 %v183
      %v248 = vunpack.c.l.bf16 %v184
      %v249 = vunpack.c.l.bf16 %v185
      %v250 = vunpack.c.l.bf16 %v186
      %v251 = vunpack.c.l.bf16 %v187
      %v252 = vunpack.c.l.bf16 %v188
      %v253 = vunpack.c.l.bf16 %v189
      %v254 = vunpack.c.l.bf16 %v190
      %v255 = vunpack.c.l.bf16 %v191
      %v256 = vunpack.c.l.bf16 %v192
      %v257 = vunpack.c.l.bf16 %v193
      %v258 = vunpack.c.l.bf16 %v194
      %v259 = vunpack.c.l.bf16 %v195
      %v260 = vunpack.c.l.bf16 %v196
      %v261 = vunpack.c.l.bf16 %v197
      %v262 = vunpack.c.l.bf16 %v198
      %v263 = vunpack.c.l.bf16 %v199
      %v264 = vunpack.c.l.bf16 %v200
      %v265 = vunpack.c.l.bf16 %v201
      %v266 = vunpack.c.l.bf16 %v202
      %v267 = vunpack.c.l.bf16 %v203
      %v268 = vunpack.c.l.bf16 %v204
      %v269 = vunpack.c.l.bf16 %v205
      %v270 = vunpack.c.l.bf16 %v206
      %v271 = vunpack.c.l.bf16 %v207
      %v272 = vunpack.c.l.bf16 %v208
      %v273 = vunpack.c.l.bf16 %v209
      %v274 = vunpack.c.l.bf16 %v210
      %v275 = vunpack.c.l.bf16 %v211
      %v276 = vunpack.c.l.bf16 %v212
      %v277 = vunpack.c.l.bf16 %v213
      %v278 = vunpack.c.l.bf16 %v214
      %v279 = vunpack.c.l.bf16 %v215
      %v280 = vunpack.c.l.bf16 %v216
      %v281 = vunpack.c.l.bf16 %v217
      %v282 = vunpack.c.l.bf16 %v218
      %v283 = vunpack.c.l.bf16 %v219
      %v284 = vunpack.c.l.bf16 %v220
      %v285 = vunpack.c.l.bf16 %v221
      %v286 = vunpack.c.l.bf16 %v222
      %v287 = vunpack.c.l.bf16 %v223
      %v288 = vunpack.c.l.bf16 %v224
      %v289 = vunpack.c.l.bf16 %v225
      %v290 = vunpack.c.l.bf16 %v226
      %v291 = vunpack.c.l.bf16 %v227
      %v292 = vunpack.c.l.bf16 %v228
      %v293 = vunpack.c.l.bf16 %v229
      %v294 = vunpack.c.l.bf16 %v230
      %v295 = vunpack.c.l.bf16 %v231
      %v296 = vunpack.c.l.bf16 %v232
      %v297 = vunpack.c.l.bf16 %v233
      %v298 = vunpack.c.l.bf16 %v234
      %v299 = vunpack.c.l.bf16 %v235
      %v300 = vunpack.c.l.bf16 %v236
      %v301 = vunpack.c.l.bf16 %v237
      %v302 = vunpack.c.l.bf16 %v238
      %v303 = vunpack.c.l.bf16 %v239
      %v304 = vunpack.c.l.bf16 %v240
      %v305 = vunpack.c.l.bf16 %v241
      %v306 = vunpack.c.l.bf16 %v242
      %v307 = vunpack.c.l.bf16 %v243
      %v308 = vunpack.c.l.bf16 %v244
      %v309 = vunpack.c.l.bf16 %v245
      %v310 = vunpack.c.l.bf16 %v246
      %v311 = vld [vmem:[%s1] sm:$0xff]
      %v312 = vld [vmem:[%s1 + $0x8] sm:$0xff]
      %v313 = vld [vmem:[%s1 + $0x10] sm:$0xff]
      %v314 = vld [vmem:[%s1 + $0x18] sm:$0xff]
      %v315 = vld [vmem:[%s1 + $0x20] sm:$0xff]
      %v316 = vld [vmem:[%s1 + $0x28] sm:$0xff]
      %v317 = vld [vmem:[%s1 + $0x30] sm:$0xff]
      %v318 = vld [vmem:[%s1 + $0x38] sm:$0xff]
      %vm319 = vcmask 523264
      %v321 = vsel %vm319, %v247, 0
      %v324 = vsel %vm319, %v248, 0
      %v327 = vsel %vm319, %v249, 0
      %v330 = vsel %vm319, %v250, 0
      %v333 = vsel %vm319, %v251, 0
      %v336 = vsel %vm319, %v252, 0
      %v339 = vsel %vm319, %v253, 0
      %v342 = vsel %vm319, %v254, 0
      %v345 = vsel %vm319, %v255, 0
      %v348 = vsel %vm319, %v256, 0
      %v351 = vsel %vm319, %v257, 0
      %v354 = vsel %vm319, %v258, 0
      %v357 = vsel %vm319, %v259, 0
      %v360 = vsel %vm319, %v260, 0
      %v363 = vsel %vm319, %v261, 0
      %v366 = vsel %vm319, %v262, 0
      %v369 = vsel %vm319, %v263, 0
      %v372 = vsel %vm319, %v264, 0
      %v375 = vsel %vm319, %v265, 0
      %v378 = vsel %vm319, %v266, 0
      %v381 = vsel %vm319, %v267, 0
      %v384 = vsel %vm319, %v268, 0
      %v387 = vsel %vm319, %v269, 0
      %v390 = vsel %vm319, %v270, 0
      %v393 = vsel %vm319, %v271, 0
      %v396 = vsel %vm319, %v272, 0
      %v399 = vsel %vm319, %v273, 0
      %v402 = vsel %vm319, %v274, 0
      %v405 = vsel %vm319, %v275, 0
      %v408 = vsel %vm319, %v276, 0
      %v411 = vsel %vm319, %v277, 0
      %v414 = vsel %vm319, %v278, 0
      %v417 = vsel %vm319, %v279, 0
      %v420 = vsel %vm319, %v280, 0
      %v423 = vsel %vm319, %v281, 0
      %v426 = vsel %vm319, %v282, 0
      %v429 = vsel %vm319, %v283, 0
      %v432 = vsel %vm319, %v284, 0
      %v435 = vsel %vm319, %v285, 0
      %v438 = vsel %vm319, %v286, 0
      %v441 = vsel %vm319, %v287, 0
      %v444 = vsel %vm319, %v288, 0
      %v447 = vsel %vm319, %v289, 0
      %v450 = vsel %vm319, %v290, 0
      %v453 = vsel %vm319, %v291, 0
      %v456 = vsel %vm319, %v292, 0
      %v459 = vsel %vm319, %v293, 0
      %v462 = vsel %vm319, %v294, 0
      %v465 = vsel %vm319, %v295, 0
      %v468 = vsel %vm319, %v296, 0
      %v471 = vsel %vm319, %v297, 0
      %v474 = vsel %vm319, %v298, 0
      %v477 = vsel %vm319, %v299, 0
      %v480 = vsel %vm319, %v300, 0
      %v483 = vsel %vm319, %v301, 0
      %v486 = vsel %vm319, %v302, 0
      %v489 = vsel %vm319, %v303, 0
      %v492 = vsel %vm319, %v304, 0
      %v495 = vsel %vm319, %v305, 0
      %v498 = vsel %vm319, %v306, 0
      %v501 = vsel %vm319, %v307, 0
      %v504 = vsel %vm319, %v308, 0
      %v507 = vsel %vm319, %v309, 0
      %v510 = vsel %vm319, %v310, 0
      %512 = vmatpush.msra.mxu0 0.0
      %513 = vmatpush.msra.mxu0 0.0
      %514 = vmatpush.msra.mxu0 0.0
      %515 = vmatpush.msra.mxu0 0.0
      %516 = vmatpush.msra.mxu0 0.0
      %517 = vmatpush.msra.mxu0 0.0
      %518 = vmatpush.msra.mxu0 0.0
      %519 = vmatpush.msra.mxu0 0.0
      %520 = vmatpush.msra.mxu0 %v318
      %521 = vmatpush.msra.mxu0 %v317
      %522 = vmatpush.msra.mxu0 %v316
      %523 = vmatpush.msra.mxu0 %v315
      %524 = vmatpush.msra.mxu0 %v314
      %525 = vmatpush.msra.mxu0 %v313
      %526 = vmatpush.msra.mxu0 %v312
      %527 = vmatpush.msra.mxu0 %v311
      %528 = vmatmul.f32.gmra.mxu0 %v321
      %v529 = vpop.f32.mrf.mxu0
      %v530 = vadd.f32 0.0, %v529
      %531 = vmatmul.f32.gmra.mxu0 %v324
      %v532 = vpop.f32.mrf.mxu0
      %v533 = vadd.f32 0.0, %v532
      %534 = vmatmul.f32.gmra.mxu0 %v327
      %v535 = vpop.f32.mrf.mxu0
      %v536 = vadd.f32 0.0, %v535
      %537 = vmatmul.f32.gmra.mxu0 %v330
      %v538 = vpop.f32.mrf.mxu0
      %v539 = vadd.f32 0.0, %v538
      %540 = vmatmul.f32.gmra.mxu0 %v333
      %v541 = vpop.f32.mrf.mxu0
      %v542 = vadd.f32 0.0, %v541
      %543 = vmatmul.f32.gmra.mxu0 %v336
      %v544 = vpop.f32.mrf.mxu0
      %v545 = vadd.f32 0.0, %v544
      %546 = vmatmul.f32.gmra.mxu0 %v339
      %v547 = vpop.f32.mrf.mxu0
      %v548 = vadd.f32 0.0, %v547
      %549 = vmatmul.f32.gmra.mxu0 %v342
      %v550 = vpop.f32.mrf.mxu0
      %v551 = vadd.f32 0.0, %v550
      %552 = vmatmul.f32.gmra.mxu0 %v345
      %v553 = vpop.f32.mrf.mxu0
      %v554 = vadd.f32 0.0, %v553
      %555 = vmatmul.f32.gmra.mxu0 %v348
      %v556 = vpop.f32.mrf.mxu0
      %v557 = vadd.f32 0.0, %v556
      %558 = vmatmul.f32.gmra.mxu0 %v351
      %v559 = vpop.f32.mrf.mxu0
      %v560 = vadd.f32 0.0, %v559
      %561 = vmatmul.f32.gmra.mxu0 %v354
      %v562 = vpop.f32.mrf.mxu0
      %v563 = vadd.f32 0.0, %v562
      %564 = vmatmul.f32.gmra.mxu0 %v357
      %v565 = vpop.f32.mrf.mxu0
      %v566 = vadd.f32 0.0, %v565
      %567 = vmatmul.f32.gmra.mxu0 %v360
      %v568 = vpop.f32.mrf.mxu0
      %v569 = vadd.f32 0.0, %v568
      %570 = vmatmul.f32.gmra.mxu0 %v363
      %v571 = vpop.f32.mrf.mxu0
      %v572 = vadd.f32 0.0, %v571
      %573 = vmatmul.f32.gmra.mxu0 %v366
      %v574 = vpop.f32.mrf.mxu0
      %v575 = vadd.f32 0.0, %v574
      %576 = vmatmul.f32.gmra.mxu0 %v369
      %v577 = vpop.f32.mrf.mxu0
      %v578 = vadd.f32 0.0, %v577
      %579 = vmatmul.f32.gmra.mxu0 %v372
      %v580 = vpop.f32.mrf.mxu0
      %v581 = vadd.f32 0.0, %v580
      %582 = vmatmul.f32.gmra.mxu0 %v375
      %v583 = vpop.f32.mrf.mxu0
      %v584 = vadd.f32 0.0, %v583
      %585 = vmatmul.f32.gmra.mxu0 %v378
      %v586 = vpop.f32.mrf.mxu0
      %v587 = vadd.f32 0.0, %v586
      %588 = vmatmul.f32.gmra.mxu0 %v381
      %v589 = vpop.f32.mrf.mxu0
      %v590 = vadd.f32 0.0, %v589
      %591 = vmatmul.f32.gmra.mxu0 %v384
      %v592 = vpop.f32.mrf.mxu0
      %v593 = vadd.f32 0.0, %v592
      %594 = vmatmul.f32.gmra.mxu0 %v387
      %v595 = vpop.f32.mrf.mxu0
      %v596 = vadd.f32 0.0, %v595
      %597 = vmatmul.f32.gmra.mxu0 %v390
      %v598 = vpop.f32.mrf.mxu0
      %v599 = vadd.f32 0.0, %v598
      %600 = vmatmul.f32.gmra.mxu0 %v393
      %v601 = vpop.f32.mrf.mxu0
      %v602 = vadd.f32 0.0, %v601
      %603 = vmatmul.f32.gmra.mxu0 %v396
      %v604 = vpop.f32.mrf.mxu0
      %v605 = vadd.f32 0.0, %v604
      %606 = vmatmul.f32.gmra.mxu0 %v399
      %v607 = vpop.f32.mrf.mxu0
      %v608 = vadd.f32 0.0, %v607
      %609 = vmatmul.f32.gmra.mxu0 %v402
      %v610 = vpop.f32.mrf.mxu0
      %v611 = vadd.f32 0.0, %v610
      %612 = vmatmul.f32.gmra.mxu0 %v405
      %v613 = vpop.f32.mrf.mxu0
      %v614 = vadd.f32 0.0, %v613
      %615 = vmatmul.f32.gmra.mxu0 %v408
      %v616 = vpop.f32.mrf.mxu0
      %v617 = vadd.f32 0.0, %v616
      %618 = vmatmul.f32.gmra.mxu0 %v411
      %v619 = vpop.f32.mrf.mxu0
      %v620 = vadd.f32 0.0, %v619
      %621 = vmatmul.f32.gmra.mxu0 %v414
      %v622 = vpop.f32.mrf.mxu0
      %v623 = vadd.f32 0.0, %v622
      %624 = vmatmul.f32.gmra.mxu0 %v417
      %v625 = vpop.f32.mrf.mxu0
      %v626 = vadd.f32 0.0, %v625
      %627 = vmatmul.f32.gmra.mxu0 %v420
      %v628 = vpop.f32.mrf.mxu0
      %v629 = vadd.f32 0.0, %v628
      %630 = vmatmul.f32.gmra.mxu0 %v423
      %v631 = vpop.f32.mrf.mxu0
      %v632 = vadd.f32 0.0, %v631
      %633 = vmatmul.f32.gmra.mxu0 %v426
      %v634 = vpop.f32.mrf.mxu0
      %v635 = vadd.f32 0.0, %v634
      %636 = vmatmul.f32.gmra.mxu0 %v429
      %v637 = vpop.f32.mrf.mxu0
      %v638 = vadd.f32 0.0, %v637
      %639 = vmatmul.f32.gmra.mxu0 %v432
      %v640 = vpop.f32.mrf.mxu0
      %v641 = vadd.f32 0.0, %v640
      %642 = vmatmul.f32.gmra.mxu0 %v435
      %v643 = vpop.f32.mrf.mxu0
      %v644 = vadd.f32 0.0, %v643
      %645 = vmatmul.f32.gmra.mxu0 %v438
      %v646 = vpop.f32.mrf.mxu0
      %v647 = vadd.f32 0.0, %v646
      %648 = vmatmul.f32.gmra.mxu0 %v441
      %v649 = vpop.f32.mrf.mxu0
      %v650 = vadd.f32 0.0, %v649
      %651 = vmatmul.f32.gmra.mxu0 %v444
      %v652 = vpop.f32.mrf.mxu0
      %v653 = vadd.f32 0.0, %v652
      %654 = vmatmul.f32.gmra.mxu0 %v447
      %v655 = vpop.f32.mrf.mxu0
      %v656 = vadd.f32 0.0, %v655
      %657 = vmatmul.f32.gmra.mxu0 %v450
      %v658 = vpop.f32.mrf.mxu0
      %v659 = vadd.f32 0.0, %v658
      %660 = vmatmul.f32.gmra.mxu0 %v453
      %v661 = vpop.f32.mrf.mxu0
      %v662 = vadd.f32 0.0, %v661
      %663 = vmatmul.f32.gmra.mxu0 %v456
      %v664 = vpop.f32.mrf.mxu0
      %v665 = vadd.f32 0.0, %v664
      %666 = vmatmul.f32.gmra.mxu0 %v459
      %v667 = vpop.f32.mrf.mxu0
      %v668 = vadd.f32 0.0, %v667
      %669 = vmatmul.f32.gmra.mxu0 %v462
      %v670 = vpop.f32.mrf.mxu0
      %v671 = vadd.f32 0.0, %v670
      %672 = vmatmul.f32.gmra.mxu0 %v465
      %v673 = vpop.f32.mrf.mxu0
      %v674 = vadd.f32 0.0, %v673
      %675 = vmatmul.f32.gmra.mxu0 %v468
      %v676 = vpop.f32.mrf.mxu0
      %v677 = vadd.f32 0.0, %v676
      %678 = vmatmul.f32.gmra.mxu0 %v471
      %v679 = vpop.f32.mrf.mxu0
      %v680 = vadd.f32 0.0, %v679
      %681 = vmatmul.f32.gmra.mxu0 %v474
      %v682 = vpop.f32.mrf.mxu0
      %v683 = vadd.f32 0.0, %v682
      %684 = vmatmul.f32.gmra.mxu0 %v477
      %v685 = vpop.f32.mrf.mxu0
      %v686 = vadd.f32 0.0, %v685
      %687 = vmatmul.f32.gmra.mxu0 %v480
      %v688 = vpop.f32.mrf.mxu0
      %v689 = vadd.f32 0.0, %v688
      %690 = vmatmul.f32.gmra.mxu0 %v483
      %v691 = vpop.f32.mrf.mxu0
      %v692 = vadd.f32 0.0, %v691
      %693 = vmatmul.f32.gmra.mxu0 %v486
      %v694 = vpop.f32.mrf.mxu0
      %v695 = vadd.f32 0.0, %v694
      %696 = vmatmul.f32.gmra.mxu0 %v489
      %v697 = vpop.f32.mrf.mxu0
      %v698 = vadd.f32 0.0, %v697
      %699 = vmatmul.f32.gmra.mxu0 %v492
      %v700 = vpop.f32.mrf.mxu0
      %v701 = vadd.f32 0.0, %v700
      %702 = vmatmul.f32.gmra.mxu0 %v495
      %v703 = vpop.f32.mrf.mxu0
      %v704 = vadd.f32 0.0, %v703
      %705 = vmatmul.f32.gmra.mxu0 %v498
      %v706 = vpop.f32.mrf.mxu0
      %v707 = vadd.f32 0.0, %v706
      %708 = vmatmul.f32.gmra.mxu0 %v501
      %v709 = vpop.f32.mrf.mxu0
      %v710 = vadd.f32 0.0, %v709
      %711 = vmatmul.f32.gmra.mxu0 %v504
      %v712 = vpop.f32.mrf.mxu0
      %v713 = vadd.f32 0.0, %v712
      %714 = vmatmul.f32.gmra.mxu0 %v507
      %v715 = vpop.f32.mrf.mxu0
      %v716 = vadd.f32 0.0, %v715
      %717 = vmatmul.f32.gmra.mxu0 %v510
      %v718 = vpop.f32.mrf.mxu0
      %v719 = vadd.f32 0.0, %v718
      %720 = vdwg.mxu0
      %vm721 = vcmask 130048
      %722 = vst.msk [vmem:[%s181] sm:$0xff] %vm721, %v530
      %723 = vst.msk [vmem:[%s181 + $0x8] sm:$0xff] %vm721, %v533
      %724 = vst.msk [vmem:[%s181 + $0x10] sm:$0xff] %vm721, %v536
      %725 = vst.msk [vmem:[%s181 + $0x18] sm:$0xff] %vm721, %v539
      %726 = vst.msk [vmem:[%s181 + $0x20] sm:$0xff] %vm721, %v542
      %727 = vst.msk [vmem:[%s181 + $0x28] sm:$0xff] %vm721, %v545
      %728 = vst.msk [vmem:[%s181 + $0x30] sm:$0xff] %vm721, %v548
      %729 = vst.msk [vmem:[%s181 + $0x38] sm:$0xff] %vm721, %v551
      %730 = vst.msk [vmem:[%s181 + $0x40] sm:$0xff] %vm721, %v554
      %731 = vst.msk [vmem:[%s181 + $0x48] sm:$0xff] %vm721, %v557
      %732 = vst.msk [vmem:[%s181 + $0x50] sm:$0xff] %vm721, %v560
      %733 = vst.msk [vmem:[%s181 + $0x58] sm:$0xff] %vm721, %v563
      %734 = vst.msk [vmem:[%s181 + $0x60] sm:$0xff] %vm721, %v566
      %735 = vst.msk [vmem:[%s181 + $0x68] sm:$0xff] %vm721, %v569
      %736 = vst.msk [vmem:[%s181 + $0x70] sm:$0xff] %vm721, %v572
      %737 = vst.msk [vmem:[%s181 + $0x78] sm:$0xff] %vm721, %v575
      %738 = vst.msk [vmem:[%s181 + $0x80] sm:$0xff] %vm721, %v578
      %739 = vst.msk [vmem:[%s181 + $0x88] sm:$0xff] %vm721, %v581
      %740 = vst.msk [vmem:[%s181 + $0x90] sm:$0xff] %vm721, %v584
      %741 = vst.msk [vmem:[%s181 + $0x98] sm:$0xff] %vm721, %v587
      %742 = vst.msk [vmem:[%s181 + $0xa0] sm:$0xff] %vm721, %v590
      %743 = vst.msk [vmem:[%s181 + $0xa8] sm:$0xff] %vm721, %v593
      %744 = vst.msk [vmem:[%s181 + $0xb0] sm:$0xff] %vm721, %v596
      %745 = vst.msk [vmem:[%s181 + $0xb8] sm:$0xff] %vm721, %v599
      %746 = vst.msk [vmem:[%s181 + $0xc0] sm:$0xff] %vm721, %v602
      %747 = vst.msk [vmem:[%s181 + $0xc8] sm:$0xff] %vm721, %v605
      %748 = vst.msk [vmem:[%s181 + $0xd0] sm:$0xff] %vm721, %v608
      %749 = vst.msk [vmem:[%s181 + $0xd8] sm:$0xff] %vm721, %v611
      %750 = vst.msk [vmem:[%s181 + $0xe0] sm:$0xff] %vm721, %v614
      %751 = vst.msk [vmem:[%s181 + $0xe8] sm:$0xff] %vm721, %v617
      %752 = vst.msk [vmem:[%s181 + $0xf0] sm:$0xff] %vm721, %v620
      %753 = vst.msk [vmem:[%s181 + $0xf8] sm:$0xff] %vm721, %v623
      %754 = vst.msk [vmem:[%s181 + $0x100] sm:$0xff] %vm721, %v626
      %755 = vst.msk [vmem:[%s181 + $0x108] sm:$0xff] %vm721, %v629
      %756 = vst.msk [vmem:[%s181 + $0x110] sm:$0xff] %vm721, %v632
      %757 = vst.msk [vmem:[%s181 + $0x118] sm:$0xff] %vm721, %v635
      %758 = vst.msk [vmem:[%s181 + $0x120] sm:$0xff] %vm721, %v638
      %759 = vst.msk [vmem:[%s181 + $0x128] sm:$0xff] %vm721, %v641
      %760 = vst.msk [vmem:[%s181 + $0x130] sm:$0xff] %vm721, %v644
      %761 = vst.msk [vmem:[%s181 + $0x138] sm:$0xff] %vm721, %v647
      %762 = vst.msk [vmem:[%s181 + $0x140] sm:$0xff] %vm721, %v650
      %763 = vst.msk [vmem:[%s181 + $0x148] sm:$0xff] %vm721, %v653
      %764 = vst.msk [vmem:[%s181 + $0x150] sm:$0xff] %vm721, %v656
      %765 = vst.msk [vmem:[%s181 + $0x158] sm:$0xff] %vm721, %v659
      %766 = vst.msk [vmem:[%s181 + $0x160] sm:$0xff] %vm721, %v662
      %767 = vst.msk [vmem:[%s181 + $0x168] sm:$0xff] %vm721, %v665
      %768 = vst.msk [vmem:[%s181 + $0x170] sm:$0xff] %vm721, %v668
      %769 = vst.msk [vmem:[%s181 + $0x178] sm:$0xff] %vm721, %v671
      %770 = vst.msk [vmem:[%s181 + $0x180] sm:$0xff] %vm721, %v674
      %771 = vst.msk [vmem:[%s181 + $0x188] sm:$0xff] %vm721, %v677
      %772 = vst.msk [vmem:[%s181 + $0x190] sm:$0xff] %vm721, %v680
      %773 = vst.msk [vmem:[%s181 + $0x198] sm:$0xff] %vm721, %v683
      %774 = vst.msk [vmem:[%s181 + $0x1a0] sm:$0xff] %vm721, %v686
      %775 = vst.msk [vmem:[%s181 + $0x1a8] sm:$0xff] %vm721, %v689
      %776 = vst.msk [vmem:[%s181 + $0x1b0] sm:$0xff] %vm721, %v692
      %777 = vst.msk [vmem:[%s181 + $0x1b8] sm:$0xff] %vm721, %v695
      %778 = vst.msk [vmem:[%s181 + $0x1c0] sm:$0xff] %vm721, %v698
      %779 = vst.msk [vmem:[%s181 + $0x1c8] sm:$0xff] %vm721, %v701
      %780 = vst.msk [vmem:[%s181 + $0x1d0] sm:$0xff] %vm721, %v704
      %781 = vst.msk [vmem:[%s181 + $0x1d8] sm:$0xff] %vm721, %v707
      %782 = vst.msk [vmem:[%s181 + $0x1e0] sm:$0xff] %vm721, %v710
      %783 = vst.msk [vmem:[%s181 + $0x1e8] sm:$0xff] %vm721, %v713
      %784 = vst.msk [vmem:[%s181 + $0x1f0] sm:$0xff] %vm721, %v716
      %785 = vst.msk [vmem:[%s181 + $0x1f8] sm:$0xff] %vm721, %v719
      %s786 = smul.u32 64, %s18
      %p787 = scmp.lt.s32.totalorder %s17, 1
      %s788 = scalar_select %p787, %s17, 1
      %p789 = scmp.lt.s32.totalorder %s786, 127
      %s790 = scalar_select %p789, %s786, 127
      %s791 = smul.addr %s788, 128
      %s792 = sadd.s32 %s790, %s791
      %s793 = smul.addr %s792, 8
      %s794 = scalar_lea.vmem %s2, %s793
      // Predicated region
      $region29: #{tpu_custom_call.1} parent=27 // pred_check
        %p795 = pneg %p94
      $region30: #{tpu_custom_call.1} parent=27 // pred_check_branch
        %797 = sbr.rel (%p795) target = $region32
      $region31: #{tpu_custom_call.1} parent=27 // pred_region
        %s798 = smul.u32 64, %s18
      $region32: #{tpu_custom_call.1} parent=27 // pred_fallthru
        _
    $region28: #{tpu_custom_call.1} parent=5 // pred_fallthru
      _
    %p799 = scmp.le.s32.totalorder 2, %s8
    // Predicated region
    $region33: #{tpu_custom_call.1} parent=5 // pred_check
      %p800 = pneg %p799
    $region34: #{tpu_custom_call.1} parent=5 // pred_check_branch
      %802 = sbr.rel (%p800) target = $region36
    $region35: #{tpu_custom_call.1} parent=5 // pred_region
      %s803 = ssub.s32 %s8, 2
      // Predicated region
      $region37: #{tpu_custom_call.1} parent=35 // pred_check
        %p804 = pneg %p100
      $region38: #{tpu_custom_call.1} parent=35 // pred_check_branch
        %806 = sbr.rel (%p804) target = $region40
      $region39: #{tpu_custom_call.1} parent=35 // pred_region
        %s807 = smul.u32 64, %s20
        %p808 = scmp.lt.s32.totalorder %s19, 1
        %s809 = scalar_select %p808, %s19, 1
        %p810 = scmp.lt.s32.totalorder %s807, 127
        %s811 = scalar_select %p810, %s807, 127
        %s812 = smul.addr %s809, 128
        %s813 = sadd.s32 %s811, %s812
        %s814 = smul.addr %s813, 8
        %s815 = scalar_lea.vmem %s2, %s814
      $region40: #{tpu_custom_call.1} parent=35 // pred_fallthru
        _
    $region36: #{tpu_custom_call.1} parent=5 // pred_fallthru
      _
  $region6: #{tpu_custom_call.1} parent=0 // loop_footer
    %s12 = sadd.s32 1, %s8
  $region7: #{tpu_custom_call.1} parent=0 // loop_footer_branch
    %7 = sbr.rel target = $region3
  $region8: #{tpu_custom_call.1} parent=0 // loop_exit
    _

</llo_original>
